<compile_context>
chip_gen: v6e
topology: v6e:2x2x1
jax: 0.10.0
libtpu: 0.0.40
codegen_flags: <defaults>
</compile_context>

<pallas_src>
import functools

import jax
import jax.numpy as jnp
from jax import lax
from jax.experimental import pallas as pl
from jax.experimental.pallas import tpu as pltpu


def _mc_debris_kernel(m_ref, x_ref, w_ref, out_ref, *, N, S, b_f):
    """m_ref:  (N*S, N*C*9+1) f32 VMEM  block-diag mask*conv-weight (+bias col)
       x_ref:  (N*C*9+1, P)   f32 VMEM  im2col activations (+ones row), P=H*W
       w_ref:  (P, 128)       f32 VMEM  fused MLP projection, zero-padded lanes
       out_ref:(N, 128)       f32 VMEM  lane-dense output; columns [:H] valid
    """
    # All S MC-dropout conv samples of all N images in ONE MXU contraction
    # (conv bias folded in via the augmented K column / ones row).
    z = jnp.dot(m_ref[...], x_ref[...], preferred_element_type=jnp.float32)
    sig = jax.nn.sigmoid(z)                                    # (N*S, P)
    # Per-image sum over the S samples: sublane-split reshape + reduce.
    ssum = jnp.sum(sig.reshape(N, S, sig.shape[-1]), axis=1)   # (N, P)
    # logit(ssum / S) == log(ssum) - log(S - ssum)   (no 1/S mul, no log1p).
    feat = jnp.log(ssum) - jnp.log(float(S) - ssum)
    # Fused linear1->linear2->linear3 projection; fused bias is a constant.
    out_ref[...] = (
        jnp.dot(feat, w_ref[...], preferred_element_type=jnp.float32) + b_f)


def make_debris_classifier(params, H, W):
    """Param-only prep (run ONCE per parameter set, with concrete params,
    outside jit).  Returns a jitted forward(features, mask) that matches the
    PyTorch eval branch; `mask` is the (num_samples, N, C) dropout2d channel
    mask with values in {0.0, 2.0} (inverse-dropout scale for p=0.5)."""
    assert W == 16, "linear1 expects 16 input features on the last axis"

    conv_w = jnp.asarray(params["conv_w"], jnp.float32)        # (1, C, 3, 3)
    C = conv_w.shape[1]
    cw = conv_w.reshape(C, 9)                                  # (C, 9)
    b0 = float(jnp.asarray(params["conv_b"]).reshape(()))      # conv bias

    # Fold linear1 -> linear2 -> linear3 (no nonlinearity between them).
    w_f = (params["w1"] @ params["w2"] @ params["w3"]).astype(jnp.float32)
    b_f = float((params["b1"] @ params["w2"] @ params["w3"]
                 + params["b2"] @ params["w3"] + params["b3"]).reshape(()))
    # Block-diagonal expansion so the projection acts directly on the
    # lane-dense (N, H*W) feature block; zero-pad to 128 output lanes so the
    # kernel's output store is lane-dense (no masked partial stores).
    w_comb = jnp.kron(jnp.eye(H, dtype=jnp.float32), w_f)      # (H*W, H)
    out_lanes = 128
    w_pad = jnp.zeros((H * W, out_lanes), jnp.float32).at[:, :H].set(w_comb)

    vmem = pl.BlockSpec(memory_space=pltpu.MemorySpace.VMEM)

    def forward(features, mask):
        x = features[-1].astype(jnp.float32)
        N, Cx, Hx, Wx = x.shape
        S = mask.shape[0]
        P = Hx * Wx                      # 128 here -> exactly one vreg row
        K = Cx * 9

        # ---- per-call prep (fuses into the same jit as the pallas_call) ----
        # im2col of zero-padded activations: X[n*K + c*9 + j, h*W + w].
        x_padded = jnp.pad(x, ((0, 0), (0, 0), (1, 1), (1, 1)))
        cols = [x_padded[:, :, ky:ky + Hx, kx:kx + Wx]
                for ky in range(3) for kx in range(3)]         # 9 x (N,C,H,W)
        x_cols = jnp.stack(cols, axis=2).reshape(N * K, P)
        x_aug = jnp.concatenate(
            [x_cols, jnp.ones((1, P), jnp.float32)], axis=0)   # (N*K+1, P)

        # Premultiplied dropout masks, block-diagonal over N, plus the
        # conv-bias column matching the ones row appended to x_aug.
        m_w = (mask.astype(jnp.float32).transpose(1, 0, 2)[:, :, :, None]
               * cw[None, None]).reshape(N, S, K)              # (N, S, K)
        m_bd = jnp.einsum("nsk,nm->nsmk", m_w,
                          jnp.eye(N, dtype=jnp.float32)).reshape(N * S, N * K)
        m_aug = jnp.concatenate(
            [m_bd, jnp.full((N * S, 1), b0, jnp.float32)], axis=1)

        kernel = functools.partial(_mc_debris_kernel, N=N, S=S, b_f=b_f)
        out = pl.pallas_call(
            kernel,
            out_shape=jax.ShapeDtypeStruct((N, out_lanes), jnp.float32),
            in_specs=[vmem, vmem, vmem],
            out_specs=vmem,
        )(m_aug, x_aug, w_pad)

        # PyTorch eval branch returns (N, 1, H, 1).
        return out[:, :Hx].reshape(N, 1, Hx, 1)

    return jax.jit(forward)


def reference_eval(features, params, mask):
    """Pure-JAX reference mirroring the PyTorch eval branch (same masks)."""
    x = features[-1].astype(jnp.float32)
    S = mask.shape[0]
    w = params["conv_w"]                            # (1, C, 3, 3), OIHW
    b = params["conv_b"]                            # (1,)
    mean = 0.0
    for s in range(S):
        xm = x * mask[s][:, :, None, None]
        y = lax.conv_general_dilated(
            xm, w, window_strides=(1, 1), padding="SAME",
            dimension_numbers=("NCHW", "OIHW", "NCHW")) + b[None, :, None, None]
        mean = mean + jax.nn.sigmoid(y)
    mean = mean / S
    feat = jnp.log(mean) - jnp.log1p(-mean)         # (N, 1, H, W)
    l1 = feat @ params["w1"] + params["b1"][0]
    l2 = l1 @ params["w2"] + params["b2"][0]
    l3 = l2 @ params["w3"] + params["b3"][0]
    return l3                                       # (N, 1, H, 1)


def init_params(key, in_channels):
    """Deterministic, PyTorch-default-style uniform(+-1/sqrt(fan_in)) init."""
    ks = jax.random.split(key, 8)

    def u(k, shape, fan_in):
        bound = 1.0 / (fan_in ** 0.5)
        return jax.random.uniform(k, shape, jnp.float32, -bound, bound)

    return {
        "conv_w": u(ks[0], (1, in_channels, 3, 3), in_channels * 9),
        "conv_b": u(ks[1], (1,), in_channels * 9),
        "w1": u(ks[2], (16, 32), 16),   # stored as W^T of torch Linear(16, 32)
        "b1": u(ks[3], (1, 32), 16),
        "w2": u(ks[4], (32, 16), 32),
        "b2": u(ks[5], (1, 16), 32),
        "w3": u(ks[6], (16, 1), 16),
        "b3": u(ks[7], (1, 1), 16),
    }


if __name__ == "__main__":
    key = jax.random.PRNGKey(0)
    N, C, H, W = 2, 4, 8, 16
    num_samples = 8   # module default is 40; kept small for the demo

    k_x0, k_x1, k_p, k_drop = jax.random.split(key, 4)
    feat0 = jax.random.normal(k_x0, (N, C, 2 * H, 2 * W), jnp.float32)  # unused level
    feat1 = jax.random.normal(k_x1, (N, C, H, W), jnp.float32)
    features = [feat0, feat1]

    params = init_params(k_p, C)

    # dropout2d(p=0.5) channel masks shared by the kernel and the reference.
    keep = jax.random.bernoulli(k_drop, 0.5, (num_samples, N, C))
    mask = keep.astype(jnp.float32) * 2.0

    forward = make_debris_classifier(params, H, W)   # param-only prep, once
    out = jax.block_until_ready(forward(features, mask))

    ref = reference_eval(features, params, mask)
    assert out.shape == (N, 1, H, 1), out.shape
    # Note: logit(mean) can be +-inf if the MC mean saturates to exactly 0/1;
    # the reference has identical behavior (matches the PyTorch module).
    max_err = float(jnp.max(jnp.abs(out - ref)))
    assert jnp.allclose(out, ref, atol=5e-5, rtol=5e-5), max_err

    print("KERNEL_OK")
</pallas_src>

<mosaic_0001>
module attributes {stable_mosaic.version = 11 : i64} {
  func.func @_mc_debris_kernel(%arg0: memref<16x73xf32, #tpu.memory_space<vmem>>, %arg1: memref<73x128xf32, #tpu.memory_space<vmem>>, %arg2: memref<128x128xf32, #tpu.memory_space<vmem>>, %arg3: memref<2x128xf32, #tpu.memory_space<vmem>>) attributes {dimension_semantics = [], scalar_prefetch = 0 : i64, scratch_operands = 0 : i64, tpu.core_type = #tpu.core_type<tc>} {
    %c0 = arith.constant 0 : index
    %c0_0 = arith.constant 0 : index
    %0 = vector.load %arg0[%c0, %c0_0] : memref<16x73xf32, #tpu.memory_space<vmem>>, vector<16x73xf32>
    %c0_1 = arith.constant 0 : index
    %c0_2 = arith.constant 0 : index
    %1 = vector.load %arg1[%c0_1, %c0_2] : memref<73x128xf32, #tpu.memory_space<vmem>>, vector<73x128xf32>
    %cst = arith.constant dense<0.000000e+00> : vector<16x128xf32>
    %2 = tpu.matmul %0, %1, %cst {dimension_numbers = #tpu.dot_dimension_numbers<[1], [0], [0], [1], [0, 0, 1, 1], [], []>} : vector<16x73xf32>, vector<73x128xf32>, vector<16x128xf32> -> vector<16x128xf32>
    %3 = arith.negf %2 : vector<16x128xf32>
    %4 = math.exp %3 : vector<16x128xf32>
    %cst_3 = arith.constant 1.000000e+00 : f32
    %5 = vector.broadcast %cst_3 : f32 to vector<16x128xf32>
    %6 = arith.addf %5, %4 : vector<16x128xf32>
    %7 = arith.divf %5, %6 : vector<16x128xf32>
    %8 = vector.shape_cast %7 : vector<16x128xf32> to vector<2x8x128xf32>
    %cst_4 = arith.constant dense<0.000000e+00> : vector<2x128xf32>
    %9 = vector.multi_reduction <add>, %8, %cst_4 [1] : vector<2x8x128xf32> to vector<2x128xf32>
    %10 = math.log %9 : vector<2x128xf32>
    %cst_5 = arith.constant 8.000000e+00 : f32
    %11 = vector.broadcast %cst_5 : f32 to vector<2x128xf32>
    %12 = arith.subf %11, %9 : vector<2x128xf32>
    %13 = math.log %12 : vector<2x128xf32>
    %14 = arith.subf %10, %13 : vector<2x128xf32>
    %c0_6 = arith.constant 0 : index
    %c0_7 = arith.constant 0 : index
    %15 = vector.load %arg2[%c0_6, %c0_7] : memref<128x128xf32, #tpu.memory_space<vmem>>, vector<128x128xf32>
    %cst_8 = arith.constant dense<0.000000e+00> : vector<2x128xf32>
    %16 = tpu.matmul %14, %15, %cst_8 {dimension_numbers = #tpu.dot_dimension_numbers<[1], [0], [0], [1], [0, 0, 1, 1], [], []>} : vector<2x128xf32>, vector<128x128xf32>, vector<2x128xf32> -> vector<2x128xf32>
    %cst_9 = arith.constant 0.247116327 : f32
    %17 = vector.broadcast %cst_9 : f32 to vector<2x128xf32>
    %18 = arith.addf %16, %17 : vector<2x128xf32>
    %c0_10 = arith.constant 0 : index
    %c0_11 = arith.constant 0 : index
    %19 = vector.load %arg3[%c0_10, %c0_11] : memref<2x128xf32, #tpu.memory_space<vmem>>, vector<2x128xf32>
    tpu.vector_store %arg3[%c0_10, %c0_11], %18 {strides = array<i32>} : memref<2x128xf32, #tpu.memory_space<vmem>>, vector<2x128xf32>,
    return
  }
}

</mosaic_0001>

<llo_original>
// kernel: forward.1
$region0: #{forward.1}
  #allocation0 [shape = 'u32[]', space=smem, size = 0x4, offset = 0x4, fixed_abs, tag = 'smem constant byte address 0x4 - core index']
  #allocation1 [shape = 'u32[144,128]{1,0:T(1,128)}', space=vmem, size = 0x12000, scoped, tag = 'internal scratch']
  %s0 = inlined_call_operand.vmem [shape: f32[16,73], index: 0, kind: input, shape index: {}]
  %s1 = inlined_call_operand.vmem [shape: f32[73,128], index: 1, kind: input, shape index: {}]
  %s2 = inlined_call_operand.vmem [shape: f32[128,128], index: 2, kind: input, shape index: {}]
  %s3 = inlined_call_operand.hbm [shape: f32[2,128], index: 3, kind: output, shape index: {}]
  %s4 = sld [smem:[#allocation0]]
  $region22: #{forward.1} parent=0
    _
  %s6 = ssub.s32 1, %s4
  %s7 = scalar_select 0, %s6, %s4
  $region1: #{forward.1} parent=0
    #allocation2 [shape = 'u8[1024]{0}', space=vmem, size = 0x400, scoped, tag = 'output window, operand 0, single buffered']
    #allocation3 [shape = 's32[1]{0}', space=sflag, size = 0x4, scoped, tag = 'scoped memory for forward.1']
    %8 = vsyncpa [#allocation3], 0
    // Predicated region
    $region2: #{forward.1} parent=1 // pred_check
      _
    $region3: #{forward.1} parent=1 // pred_check_branch
      %10 = sbr.rel (0) target = $region5
    $region4: #{forward.1} parent=1 // pred_region
      _
    $region5: #{forward.1} parent=1 // pred_fallthru
      _
    // Predicated region
    $region6: #{forward.1} parent=1 // pred_check
      _
    $region7: #{forward.1} parent=1 // pred_check_branch
      %12 = sbr.rel (0) target = $region9
    $region8: #{forward.1} parent=1 // pred_region
      _
    $region9: #{forward.1} parent=1 // pred_fallthru
      _
    // Predicated region
    $region10: #{forward.1} parent=1 // pred_check
      _
    $region11: #{forward.1} parent=1 // pred_check_branch
      %14 = sbr.rel (0) target = $region13
    $region12: #{forward.1} parent=1 // pred_region
      _
    $region13: #{forward.1} parent=1 // pred_fallthru
      _
    %v15 = vld [vmem:[%s0] sm:$0xff]
    %v16 = vld [vmem:[%s0 + $0x8] sm:$0xff]
    %v17 = vld [vmem:[%s1] sm:$0xff]
    %v18 = vld [vmem:[%s1 + $0x8] sm:$0xff]
    %v19 = vld [vmem:[%s1 + $0x10] sm:$0xff]
    %v20 = vld [vmem:[%s1 + $0x18] sm:$0xff]
    %v21 = vld [vmem:[%s1 + $0x20] sm:$0xff]
    %v22 = vld [vmem:[%s1 + $0x28] sm:$0xff]
    %v23 = vld [vmem:[%s1 + $0x30] sm:$0xff]
    %v24 = vld [vmem:[%s1 + $0x38] sm:$0xff]
    %v25 = vld [vmem:[%s1 + $0x40] sm:$0xff]
    %v26 = vld [vmem:[%s1 + $0x48] sm:$0x1]
    %vm27 = vcmask 596992
    %v29 = vsel %vm27, %v15, 0
    %v32 = vsel %vm27, %v16, 0
    %vm34 = vcmask 1040384
    %v36 = vsel %vm34, %v26, 0
    %38 = vmatprep.subr.mxu0 0.0
    %39 = vmatpush1.msra.mxu0 0.0
    %40 = vmatprep.subr.mxu0 0.0
    %41 = vmatpush1.msra.mxu0 0.0
    %42 = vmatprep.subr.mxu0 0.0
    %43 = vmatpush1.msra.mxu0 0.0
    %44 = vmatprep.subr.mxu0 0.0
    %45 = vmatpush1.msra.mxu0 0.0
    %46 = vmatprep.subr.mxu0 0.0
    %47 = vmatpush1.msra.mxu0 0.0
    %48 = vmatprep.subr.mxu0 0.0
    %49 = vmatpush1.msra.mxu0 0.0
    %50 = vmatprep.subr.mxu0 0.0
    %51 = vmatpush1.msra.mxu0 %v36
    %52 = vmatprep.subr.mxu0 0.0
    %53 = vmatpush1.msra.mxu0 %v25
    %54 = vmatprep.subr.mxu0 0.0
    %55 = vmatpush1.msra.mxu0 %v24
    %56 = vmatprep.subr.mxu0 0.0
    %57 = vmatpush1.msra.mxu0 %v23
    %58 = vmatprep.subr.mxu0 0.0
    %59 = vmatpush1.msra.mxu0 %v22
    %60 = vmatprep.subr.mxu0 0.0
    %61 = vmatpush1.msra.mxu0 %v21
    %62 = vmatprep.subr.mxu0 0.0
    %63 = vmatpush1.msra.mxu0 %v20
    %64 = vmatprep.subr.mxu0 0.0
    %65 = vmatpush1.msra.mxu0 %v19
    %66 = vmatprep.subr.mxu0 0.0
    %67 = vmatpush1.msra.mxu0 %v18
    %68 = vmatprep.subr.mxu0 0.0
    %69 = vmatpush1.msra.mxu0 %v17
    %70 = vmatprep.subr.mxu0 0.0
    %71 = vmatpush2.msra.mxu0 0.0
    %72 = vmatprep.subr.mxu0 0.0
    %73 = vmatpush2.msra.mxu0 0.0
    %74 = vmatprep.subr.mxu0 0.0
    %75 = vmatpush2.msra.mxu0 0.0
    %76 = vmatprep.subr.mxu0 0.0
    %77 = vmatpush2.msra.mxu0 0.0
    %78 = vmatprep.subr.mxu0 0.0
    %79 = vmatpush2.msra.mxu0 0.0
    %80 = vmatprep.subr.mxu0 0.0
    %81 = vmatpush2.msra.mxu0 0.0
    %82 = vmatprep.subr.mxu0 0.0
    %83 = vmatpush2.msra.mxu0 0.0
    %84 = vmatprep.subr.mxu0 0.0
    %85 = vmatpush2.msra.mxu0 0.0
    %86 = vmatprep.subr.mxu0 0.0
    %87 = vmatpush2.msra.mxu0 0.0
    %88 = vmatprep.subr.mxu0 0.0
    %89 = vmatpush2.msra.mxu0 0.0
    %90 = vmatprep.subr.mxu0 0.0
    %91 = vmatpush2.msra.mxu0 0.0
    %92 = vmatprep.subr.mxu0 0.0
    %93 = vmatpush2.msra.mxu0 0.0
    %94 = vmatprep.subr.mxu0 0.0
    %95 = vmatpush2.msra.mxu0 0.0
    %96 = vmatprep.subr.mxu0 0.0
    %97 = vmatpush2.msra.mxu0 0.0
    %98 = vmatprep.subr.mxu0 0.0
    %99 = vmatpush2.msra.mxu0 0.0
    %100 = vmatprep.subr.mxu0 0.0
    %101 = vmatpush2.msra.mxu0 0.0
    %102 = vmatprep.mubr.f32.mxu0 0.0
    %103 = vmatmul.mubr.f32.gmra.mxu0 %v29
    %v104 = vpop.f32.mrf.mxu0
    %v105 = vadd.f32 0.0, %v104
    %v106 = vpop.f32.mrf.mxu0
    %107 = vmatprep.mubr.f32.mxu0 0.0
    %108 = vmatmul.mubr.f32.gmra.mxu0 %v32
    %v109 = vpop.f32.mrf.mxu0
    %v110 = vadd.f32 0.0, %v109
    %v111 = vpop.f32.mrf.mxu0
    %112 = vdwg.mxu0
    %v113 = vxor.u32 %v105, 2147483648
    %v114 = vxor.u32 %v110, 2147483648
    %v115 = vmul.f32 %v113, 1.442695
    %v116 = vpow.pop %v115
    %v117 = vmul.f32 %v114, 1.442695
    %v118 = vpow.pop %v117
    %v119 = vadd.f32 %v116, 1.0
    %v120 = vadd.f32 %v118, 1.0
    %v121 = vrcp.pop %v119
    %v122 = vmul.f32 1.0, %v121
    %v123 = vrcp.pop %v120
    %v124 = vmul.f32 1.0, %v123
    %v125 = vrot.slane %v122, 4
    %v126 = vadd.f32 %v122, %v125
    %v127 = vrot.slane %v126, 2
    %v128 = vadd.f32 %v126, %v127
    %v129 = vrot.slane %v128, 1
    %v130 = vadd.f32 %v128, %v129
    %v131 = vrot.slane %v124, 4
    %v132 = vadd.f32 %v124, %v131
    %v133 = vrot.slane %v132, 2
    %v134 = vadd.f32 %v132, %v133
    %v135 = vrot.slane %v134, 1
    %v136 = vadd.f32 %v134, %v135
    %v137 = vlog2.pop %v130
    %v138 = vmul.f32 %v137, 0.6931472
    %v139 = vlog2.pop %v136
    %v140 = vmul.f32 %v139, 0.6931472
    %v141 = vsub.f32 8.0, %v130
    %v142 = vsub.f32 8.0, %v136
    %v143 = vlog2.pop %v141
    %v144 = vmul.f32 %v143, 0.6931472
    %v145 = vlog2.pop %v142
    %v146 = vmul.f32 %v145, 0.6931472
    %v147 = vsub.f32 %v138, %v144
    %v148 = vsub.f32 %v140, %v146
    %v149 = vld [vmem:[%s2] sm:$0xff]
    %v150 = vld [vmem:[%s2 + $0x8] sm:$0xff]
    %v151 = vld [vmem:[%s2 + $0x10] sm:$0xff]
    %v152 = vld [vmem:[%s2 + $0x18] sm:$0xff]
    %v153 = vld [vmem:[%s2 + $0x20] sm:$0xff]
    %v154 = vld [vmem:[%s2 + $0x28] sm:$0xff]
    %v155 = vld [vmem:[%s2 + $0x30] sm:$0xff]
    %v156 = vld [vmem:[%s2 + $0x38] sm:$0xff]
    %v157 = vld [vmem:[%s2 + $0x40] sm:$0xff]
    %v158 = vld [vmem:[%s2 + $0x48] sm:$0xff]
    %v159 = vld [vmem:[%s2 + $0x50] sm:$0xff]
    %v160 = vld [vmem:[%s2 + $0x58] sm:$0xff]
    %v161 = vld [vmem:[%s2 + $0x60] sm:$0xff]
    %v162 = vld [vmem:[%s2 + $0x68] sm:$0xff]
    %v163 = vld [vmem:[%s2 + $0x70] sm:$0xff]
    %v164 = vld [vmem:[%s2 + $0x78] sm:$0xff]
    %vm167 = vcmask 1041409
    %v168 = vsel %vm167, %v148, %v147
    %170 = vmatprep.subr.mxu0 0.0
    %171 = vmatpush1.msra.mxu0 %v164
    %172 = vmatprep.subr.mxu0 0.0
    %173 = vmatpush1.msra.mxu0 %v163
    %174 = vmatprep.subr.mxu0 0.0
    %175 = vmatpush1.msra.mxu0 %v162
    %176 = vmatprep.subr.mxu0 0.0
    %177 = vmatpush1.msra.mxu0 %v161
    %178 = vmatprep.subr.mxu0 0.0
    %179 = vmatpush1.msra.mxu0 %v160
    %180 = vmatprep.subr.mxu0 0.0
    %181 = vmatpush1.msra.mxu0 %v159
    %182 = vmatprep.subr.mxu0 0.0
    %183 = vmatpush1.msra.mxu0 %v158
    %184 = vmatprep.subr.mxu0 0.0
    %185 = vmatpush1.msra.mxu0 %v157
    %186 = vmatprep.subr.mxu0 0.0
    %187 = vmatpush1.msra.mxu0 %v156
    %188 = vmatprep.subr.mxu0 0.0
    %189 = vmatpush1.msra.mxu0 %v155
    %190 = vmatprep.subr.mxu0 0.0
    %191 = vmatpush1.msra.mxu0 %v154
    %192 = vmatprep.subr.mxu0 0.0
    %193 = vmatpush1.msra.mxu0 %v153
    %194 = vmatprep.subr.mxu0 0.0
    %195 = vmatpush1.msra.mxu0 %v152
    %196 = vmatprep.subr.mxu0 0.0
    %197 = vmatpush1.msra.mxu0 %v151
    %198 = vmatprep.subr.mxu0 0.0
    %199 = vmatpush1.msra.mxu0 %v150
    %200 = vmatprep.subr.mxu0 0.0
    %201 = vmatpush1.msra.mxu0 %v149
    %202 = vmatprep.subr.mxu0 0.0
    %203 = vmatpush2.msra.mxu0 0.0
    %204 = vmatprep.subr.mxu0 0.0
    %205 = vmatpush2.msra.mxu0 0.0
    %206 = vmatprep.subr.mxu0 0.0
    %207 = vmatpush2.msra.mxu0 0.0
    %208 = vmatprep.subr.mxu0 0.0
    %209 = vmatpush2.msra.mxu0 0.0
    %210 = vmatprep.subr.mxu0 0.0
    %211 = vmatpush2.msra.mxu0 0.0
    %212 = vmatprep.subr.mxu0 0.0
    %213 = vmatpush2.msra.mxu0 0.0
    %214 = vmatprep.subr.mxu0 0.0
    %215 = vmatpush2.msra.mxu0 0.0
    %216 = vmatprep.subr.mxu0 0.0
    %217 = vmatpush2.msra.mxu0 0.0
    %218 = vmatprep.subr.mxu0 0.0
    %219 = vmatpush2.msra.mxu0 0.0
    %220 = vmatprep.subr.mxu0 0.0
    %221 = vmatpush2.msra.mxu0 0.0
    %222 = vmatprep.subr.mxu0 0.0
    %223 = vmatpush2.msra.mxu0 0.0
    %224 = vmatprep.subr.mxu0 0.0
    %225 = vmatpush2.msra.mxu0 0.0
    %226 = vmatprep.subr.mxu0 0.0
    %227 = vmatpush2.msra.mxu0 0.0
    %228 = vmatprep.subr.mxu0 0.0
    %229 = vmatpush2.msra.mxu0 0.0
    %230 = vmatprep.subr.mxu0 0.0
    %231 = vmatpush2.msra.mxu0 0.0
    %232 = vmatprep.subr.mxu0 0.0
    %233 = vmatpush2.msra.mxu0 0.0
    %234 = vmatprep.mubr.f32.mxu0 0.0
    %235 = vmatmul.mubr.f32.gmra.mxu0 %v168
    %v236 = vpop.f32.mrf.mxu0
    %v237 = vadd.f32 0.24711633, %v236
    %v238 = vpop.f32.mrf.mxu0
    %239 = vdwg.mxu0
    %240 = vst [vmem:[#allocation2] sm:$0x3] %v237
    // Predicated region
    $region14: #{forward.1} parent=1 // pred_check
      _
    $region15: #{forward.1} parent=1 // pred_check_branch
      %242 = sbr.rel (0) target = $region17
    $region16: #{forward.1} parent=1 // pred_region
      %s244 = ssub.s32 32, 32
      %245 = vsyncadd [#allocation3], %s244
      %s247 = sshll.u32 [#allocation2], 4
      %s248 = int_to_ptr.vmem [resolvable:$true] %s247
      %250 = dma.vmem_to_hbm [thread:$0]  %s248, 32, %s3, [#allocation3]
    $region17: #{forward.1} parent=1 // pred_fallthru
      _
    // Predicated region
    $region18: #{forward.1} parent=1 // pred_check
      _
    $region19: #{forward.1} parent=1 // pred_check_branch
      %252 = sbr.rel (0) target = $region21
    $region20: #{forward.1} parent=1 // pred_region
      %253 = dma.done [#allocation3], 32
    $region21: #{forward.1} parent=1 // pred_fallthru
      _
    %254 = vsyncpa [#allocation3], 1

</llo_original>
